<compile_context>
chip_gen: v5e
topology: v5e:2x2
jax: 0.10.0
libtpu: 0.0.40
codegen_flags: <defaults>
</compile_context>

<pallas_src>
import functools

import jax
import jax.numpy as jnp
from jax.experimental import pallas as pl
from jax.experimental.pallas import tpu as pltpu


DROPOUT_P = 0.5  # nn.Dropout() default
_KEEP_SCALE = 1.0 / (1.0 - DROPOUT_P)
# keep iff hash >= threshold  ->  P(keep) = 1 - p   (p=0.5 -> threshold = 2^31)
_DROP_THRESHOLD = min(int(DROPOUT_P * (2 ** 32)), 2 ** 32 - 1)


def _round_up(x, m):
    return ((x + m - 1) // m) * m


def _blockfc_kernel(seed_ref, x_ref, w_ref, b_ref, o_ref, *,
                    training: bool, n_true: int):
    # Grid-position / scalar reads stay at the top level of the kernel body
    # (NOT inside pl.when closures) so they are substituted correctly by both
    # the Mosaic lowering and the CPU interpret fallback.
    i = pl.program_id(0)
    j = pl.program_id(1)
    k = pl.program_id(2)
    nk = pl.num_programs(2)
    seed = seed_ref[0]

    @pl.when(k == 0)
    def _():
        o_ref[...] = jnp.zeros_like(o_ref)

    # bf16 x bf16 -> f32 accumulation on the MXU, directly into the resident
    # f32 output tile (output block index is independent of k).
    o_ref[...] += jnp.dot(x_ref[...], w_ref[...],
                          preferred_element_type=jnp.float32)

    @pl.when(k == nk - 1)
    def _():
        tm, tn = o_ref.shape
        y = o_ref[...] + b_ref[...]          # (1, tn) bias broadcasts over rows
        y = jnp.maximum(y, 0.0)              # ReLU

        if training:
            # Global element id for this tile -> mask decorrelated across tiles
            # but independent of padding / tile configuration (keyed on true N).
            rows = jax.lax.broadcasted_iota(jnp.int32, (tm, tn), 0) + i * tm
            cols = jax.lax.broadcasted_iota(jnp.int32, (tm, tn), 1) + j * tn
            gid = (rows.astype(jnp.uint32) * jnp.uint32(n_true)
                   + cols.astype(jnp.uint32))
            # lowbias32-style integer mixing (counter-based PRNG, VPU only).
            h = gid + seed.astype(jnp.uint32) * jnp.uint32(0x9E3779B9)
            h = h ^ (h >> 16)
            h = h * jnp.uint32(0x7FEB352D)
            h = h ^ (h >> 15)
            h = h * jnp.uint32(0x846CA68B)
            h = h ^ (h >> 16)
            keep = h >= jnp.uint32(_DROP_THRESHOLD)
            y = jnp.where(keep, y * _KEEP_SCALE, 0.0)

        o_ref[...] = y


def block_fc(x, w_t, b, seed, *, training=True,
             tm=None, tn=512, tk=512,
             compute_dtype=jnp.bfloat16,
             vmem_limit_bytes=48 * 1024 * 1024):
    """x: (M, K), w_t: (K, N) (transposed PyTorch weight), b: (N,)."""
    M, K = x.shape
    K2, N = w_t.shape
    assert K == K2 and b.shape == (N,)

    # --- tile selection -----------------------------------------------------
    m_align = 16 if compute_dtype == jnp.bfloat16 else 8   # bf16 packs 16 rows
    m_pad0 = _round_up(M, m_align)
    if tm is None:
        # Collapse the M grid to one tile when the batch fits: each weight
        # panel (tk, tn) is then DMA'd exactly once.
        tm = m_pad0 if m_pad0 <= 1024 else 512
    tm = _round_up(max(m_align, min(tm, m_pad0)), m_align)
    tn = _round_up(max(128, min(tn, _round_up(N, 128))), 128)
    tk = _round_up(max(128, min(tk, _round_up(K, 128))), 128)

    m_pad = _round_up(M, tm)
    n_pad = _round_up(N, tn)
    k_pad = _round_up(K, tk)

    # Keep >= 2 tiles on a parallel grid axis so both v7x TensorCores get work.
    if (m_pad // tm) * (n_pad // tn) < 2 and n_pad >= 256:
        tn = _round_up(n_pad // 2, 128)
        n_pad = _round_up(N, tn)

    # --- pad / cast (skipped when already aligned / already compute_dtype) ---
    x_p = x if (m_pad, k_pad) == (M, K) else jnp.pad(
        x, ((0, m_pad - M), (0, k_pad - K)))
    if x_p.dtype != compute_dtype:
        x_p = x_p.astype(compute_dtype)
    w_p = w_t if (k_pad, n_pad) == (K, N) else jnp.pad(
        w_t, ((0, k_pad - K), (0, n_pad - N)))
    if w_p.dtype != compute_dtype:
        w_p = w_p.astype(compute_dtype)
    b_p = b if n_pad == N else jnp.pad(b, (0, n_pad - N))
    b_p = b_p.astype(jnp.float32).reshape(1, n_pad)
    seed_arr = jnp.asarray([seed], dtype=jnp.int32)

    kernel = functools.partial(_blockfc_kernel, training=training, n_true=N)

    out = pl.pallas_call(
        kernel,
        out_shape=jax.ShapeDtypeStruct((m_pad, n_pad), jnp.float32),
        grid_spec=pltpu.PrefetchScalarGridSpec(
            num_scalar_prefetch=1,
            grid=(m_pad // tm, n_pad // tn, k_pad // tk),
            in_specs=[
                pl.BlockSpec((tm, tk), lambda i, j, k, seed: (i, k)),   # x
                pl.BlockSpec((tk, tn), lambda i, j, k, seed: (k, j)),   # W^T
                pl.BlockSpec((1, tn), lambda i, j, k, seed: (0, j)),    # bias
            ],
            out_specs=pl.BlockSpec((tm, tn), lambda i, j, k, seed: (i, j)),
        ),
        compiler_params=pltpu.CompilerParams(
            dimension_semantics=("parallel", "parallel", "arbitrary"),
            vmem_limit_bytes=vmem_limit_bytes),
    )(seed_arr, x_p, w_p, b_p)

    if (m_pad, n_pad) != (M, N):
        out = out[:M, :N]
    if out.dtype != x.dtype:
        out = out.astype(x.dtype)
    return out


if __name__ == "__main__":
    # Small but lane-dense shapes: K spans the contraction axis, N splits into
    # two 128-wide output tiles (so a parallel grid axis has extent >= 2).
    batch, in_features, out_features = 16, 512, 256

    key = jax.random.PRNGKey(0)
    kx, kw, kb = jax.random.split(key, 3)

    x = jax.random.normal(kx, (batch, in_features), dtype=jnp.float32)
    bound = 1.0 / (in_features ** 0.5)
    # PyTorch Linear weight is (out, in); kernel uses its transpose (in, out).
    w_pt = jax.random.uniform(kw, (out_features, in_features),
                              minval=-bound, maxval=bound, dtype=jnp.float32)
    b = jax.random.uniform(kb, (out_features,),
                           minval=-bound, maxval=bound, dtype=jnp.float32)
    w_t = w_pt.T

    out_train = jax.block_until_ready(block_fc(x, w_t, b, seed=0, training=True))
    out_eval = jax.block_until_ready(block_fc(x, w_t, b, seed=0, training=False))

    assert out_train.shape == (batch, out_features)
    assert out_eval.dtype == x.dtype

    # Eval mode matches the f32 reference (bf16 MXU operands -> loose tol).
    ref = jnp.maximum(x @ w_t + b, 0.0)
    assert jnp.allclose(out_eval, ref, atol=5e-2, rtol=5e-2)

    # Dropout consistency: every kept (nonzero) training value equals exactly
    # 2x the eval value; roughly half the positive activations are dropped.
    err = jnp.where(out_train != 0.0, jnp.abs(out_train - 2.0 * out_eval), 0.0)
    assert float(err.max()) < 1e-4
    pos = ref > 0.0
    drop_frac = float(jnp.sum((out_train == 0.0) & pos) /
                      jnp.maximum(jnp.sum(pos), 1))
    assert 0.3 < drop_frac < 0.7

    print("KERNEL_OK")
</pallas_src>

<mosaic_0001>
module attributes {stable_mosaic.version = 11 : i64} {
  func.func @_blockfc_kernel(%arg0: i32, %arg1: i32, %arg2: i32, %arg3: memref<1xi32, #tpu.memory_space<smem>>, %arg4: memref<16x512xbf16, #tpu.memory_space<vmem>>, %arg5: memref<512x128xbf16, #tpu.memory_space<vmem>>, %arg6: memref<1x128xf32, #tpu.memory_space<vmem>>, %arg7: memref<16x128xf32, #tpu.memory_space<vmem>>) attributes {dimension_semantics = [#tpu.dimension_semantics<parallel>, #tpu.dimension_semantics<parallel>, #tpu.dimension_semantics<arbitrary>], iteration_bounds = array<i64: 1, 2, 1>, scalar_prefetch = 1 : i64, scratch_operands = 0 : i64, tpu.core_type = #tpu.core_type<tc>, window_params = [{transform_indices = @transform_0, window_bounds = array<i64: 16, 512>}, {transform_indices = @transform_1, window_bounds = array<i64: 512, 128>}, {transform_indices = @transform_2, window_bounds = array<i64: 1, 128>}, {transform_indices = @transform_3, window_bounds = array<i64: 16, 128>}]} {
    %c0 = arith.constant 0 : index
    %0 = memref.load %arg3[%c0] : memref<1xi32, #tpu.memory_space<smem>>
    %c0_i32 = arith.constant 0 : i32
    %1 = arith.cmpi eq, %arg2, %c0_i32 : i32
    %2 = arith.extui %1 : i1 to i32
    %c0_i32_0 = arith.constant 0 : i32
    %3 = arith.cmpi ne, %2, %c0_i32_0 : i32
    scf.if %3 {
      %cst_11 = arith.constant 0.000000e+00 : f32
      %13 = vector.broadcast %cst_11 : f32 to vector<16x128xf32>
      %c0_12 = arith.constant 0 : index
      %c0_13 = arith.constant 0 : index
      %14 = vector.load %arg7[%c0_12, %c0_13] : memref<16x128xf32, #tpu.memory_space<vmem>>, vector<16x128xf32>
      tpu.vector_store %arg7[%c0_12, %c0_13], %13 {strides = array<i32>} : memref<16x128xf32, #tpu.memory_space<vmem>>, vector<16x128xf32>,
    } else {
    }
    %c0_1 = arith.constant 0 : index
    %c0_2 = arith.constant 0 : index
    %4 = vector.load %arg7[%c0_1, %c0_2] : memref<16x128xf32, #tpu.memory_space<vmem>>, vector<16x128xf32>
    %c0_3 = arith.constant 0 : index
    %c0_4 = arith.constant 0 : index
    %5 = vector.load %arg4[%c0_3, %c0_4] : memref<16x512xbf16, #tpu.memory_space<vmem>>, vector<16x512xbf16>
    %c0_5 = arith.constant 0 : index
    %c0_6 = arith.constant 0 : index
    %6 = vector.load %arg5[%c0_5, %c0_6] : memref<512x128xbf16, #tpu.memory_space<vmem>>, vector<512x128xbf16>
    %cst = arith.constant dense<0.000000e+00> : vector<16x128xf32>
    %7 = tpu.matmul %5, %6, %cst {dimension_numbers = #tpu.dot_dimension_numbers<[1], [0], [0], [1], [0, 0, 1, 1], [], []>} : vector<16x512xbf16>, vector<512x128xbf16>, vector<16x128xf32> -> vector<16x128xf32>
    %8 = arith.addf %4, %7 : vector<16x128xf32>
    %c0_7 = arith.constant 0 : index
    %c0_8 = arith.constant 0 : index
    %9 = vector.load %arg7[%c0_7, %c0_8] : memref<16x128xf32, #tpu.memory_space<vmem>>, vector<16x128xf32>
    tpu.vector_store %arg7[%c0_7, %c0_8], %8 {strides = array<i32>} : memref<16x128xf32, #tpu.memory_space<vmem>>, vector<16x128xf32>,
    %c0_i32_9 = arith.constant 0 : i32
    %10 = arith.cmpi eq, %arg2, %c0_i32_9 : i32
    %11 = arith.extui %10 : i1 to i32
    %c0_i32_10 = arith.constant 0 : i32
    %12 = arith.cmpi ne, %11, %c0_i32_10 : i32
    scf.if %12 {
      %c0_11 = arith.constant 0 : index
      %c0_12 = arith.constant 0 : index
      %13 = vector.load %arg7[%c0_11, %c0_12] : memref<16x128xf32, #tpu.memory_space<vmem>>, vector<16x128xf32>
      %c0_13 = arith.constant 0 : index
      %c0_14 = arith.constant 0 : index
      %14 = vector.load %arg6[%c0_13, %c0_14] : memref<1x128xf32, #tpu.memory_space<vmem>>, vector<1x128xf32>
      %15 = vector.broadcast %14 : vector<1x128xf32> to vector<16x128xf32>
      %16 = arith.addf %13, %15 : vector<16x128xf32>
      %cst_15 = arith.constant 0.000000e+00 : f32
      %17 = vector.broadcast %cst_15 : f32 to vector<16x128xf32>
      %18 = arith.maximumf %16, %17 : vector<16x128xf32>
      %19 = tpu.iota {dimensions = array<i32: 0>} : vector<16x128xi32>
      %c16_i32 = arith.constant 16 : i32
      %20 = arith.muli %arg0, %c16_i32 : i32
      %21 = vector.broadcast %20 : i32 to vector<16x128xi32>
      %22 = arith.addi %19, %21 : vector<16x128xi32>
      %23 = tpu.iota {dimensions = array<i32: 1>} : vector<16x128xi32>
      %c128_i32 = arith.constant 128 : i32
      %24 = arith.muli %arg1, %c128_i32 : i32
      %25 = vector.broadcast %24 : i32 to vector<16x128xi32>
      %26 = arith.addi %23, %25 : vector<16x128xi32>
      %c256_i32 = arith.constant 256 : i32
      %27 = vector.broadcast %c256_i32 : i32 to vector<16x128xi32>
      %28 = arith.muli %22, %27 : vector<16x128xi32>
      %29 = arith.addi %28, %26 : vector<16x128xi32>
      %c-1640531527_i32 = arith.constant -1640531527 : i32
      %30 = arith.muli %0, %c-1640531527_i32 : i32
      %31 = vector.broadcast %30 : i32 to vector<16x128xi32>
      %32 = arith.addi %29, %31 : vector<16x128xi32>
      %c16_i32_16 = arith.constant 16 : i32
      %33 = vector.broadcast %c16_i32_16 : i32 to vector<16x128xi32>
      %34 = arith.shrui %32, %33 : vector<16x128xi32>
      %35 = arith.xori %32, %34 : vector<16x128xi32>
      %c2146121005_i32 = arith.constant 2146121005 : i32
      %36 = vector.broadcast %c2146121005_i32 : i32 to vector<16x128xi32>
      %37 = arith.muli %35, %36 : vector<16x128xi32>
      %c15_i32 = arith.constant 15 : i32
      %38 = vector.broadcast %c15_i32 : i32 to vector<16x128xi32>
      %39 = arith.shrui %37, %38 : vector<16x128xi32>
      %40 = arith.xori %37, %39 : vector<16x128xi32>
      %c-2073254261_i32 = arith.constant -2073254261 : i32
      %41 = vector.broadcast %c-2073254261_i32 : i32 to vector<16x128xi32>
      %42 = arith.muli %40, %41 : vector<16x128xi32>
      %c16_i32_17 = arith.constant 16 : i32
      %43 = vector.broadcast %c16_i32_17 : i32 to vector<16x128xi32>
      %44 = arith.shrui %42, %43 : vector<16x128xi32>
      %45 = arith.xori %42, %44 : vector<16x128xi32>
      %c-2147483648_i32 = arith.constant -2147483648 : i32
      %46 = vector.broadcast %c-2147483648_i32 : i32 to vector<16x128xi32>
      %47 = arith.cmpi uge, %45, %46 : vector<16x128xi32>
      %cst_18 = arith.constant 2.000000e+00 : f32
      %48 = vector.broadcast %cst_18 : f32 to vector<16x128xf32>
      %49 = arith.mulf %18, %48 : vector<16x128xf32>
      %cst_19 = arith.constant 0.000000e+00 : f32
      %50 = vector.broadcast %cst_19 : f32 to vector<16x128xf32>
      %51 = arith.select %47, %49, %50 : vector<16x128xi1>, vector<16x128xf32>
      %c0_20 = arith.constant 0 : index
      %c0_21 = arith.constant 0 : index
      %52 = vector.load %arg7[%c0_20, %c0_21] : memref<16x128xf32, #tpu.memory_space<vmem>>, vector<16x128xf32>
      tpu.vector_store %arg7[%c0_20, %c0_21], %51 {strides = array<i32>} : memref<16x128xf32, #tpu.memory_space<vmem>>, vector<16x128xf32>,
    } else {
    }
    return
  }
  func.func @transform_0(%arg0: i32, %arg1: i32, %arg2: i32, %arg3: memref<1xi32, #tpu.memory_space<smem>>) -> (i32, i32) {
    %c0_i32 = arith.constant 0 : i32
    return %arg0, %arg2 : i32, i32
  }
  func.func @transform_1(%arg0: i32, %arg1: i32, %arg2: i32, %arg3: memref<1xi32, #tpu.memory_space<smem>>) -> (i32, i32) {
    %c0_i32 = arith.constant 0 : i32
    return %arg2, %arg1 : i32, i32
  }
  func.func @transform_2(%arg0: i32, %arg1: i32, %arg2: i32, %arg3: memref<1xi32, #tpu.memory_space<smem>>) -> (i32, i32) {
    %c0_i32 = arith.constant 0 : i32
    %c0_i32_0 = arith.constant 0 : i32
    return %c0_i32, %arg1 : i32, i32
  }
  func.func @transform_3(%arg0: i32, %arg1: i32, %arg2: i32, %arg3: memref<1xi32, #tpu.memory_space<smem>>) -> (i32, i32) {
    %c0_i32 = arith.constant 0 : i32
    return %arg0, %arg1 : i32, i32
  }
}

</mosaic_0001>

<llo_original>
// kernel: tpu_custom_call.1
$region0: #{tpu_custom_call.1}
  #allocation0 [shape = 'u32[]', space=smem, size = 0x4, offset = 0x4, fixed_abs, tag = 'smem constant byte address 0x4 - core index']
  #allocation1 [shape = 'u32[72,128]{1,0:T(1,128)}', space=vmem, size = 0x9000, scoped, tag = 'internal scratch']
  #allocation2 [shape = 's32[1]{0}', space=sflag, size = 0x4, scoped, tag = 'scoped memory for tpu_custom_call.1']
  #allocation3 [shape = 's32[1]{0:T(128)S(6)}', space=smem, size = 0x200, scoped, tag = 'prefetched SMEM operand 0']
  %s0 = inlined_call_operand.<no memory space> [shape: s32[1], index: 0, kind: input, shape index: {}]
  %s1 = inlined_call_operand.hbm [shape: bf16[16,512], index: 1, kind: input, shape index: {}]
  %s2 = inlined_call_operand.hbm [shape: bf16[512,256], index: 2, kind: input, shape index: {}]
  %s3 = inlined_call_operand.vmem [shape: f32[1,256], index: 3, kind: input, shape index: {}]
  %s4 = inlined_call_operand.hbm [shape: f32[16,256], index: 4, kind: output, shape index: {}]
  %s5 = sld [smem:[#allocation0]]
  $region61: #{tpu_custom_call.1} parent=0
    _
  %s7 = ssub.s32 1, %s5
  %s8 = scalar_select 0, %s7, %s5
  %9 = sst [smem:[#allocation3]] %s0
  $region1: #{tpu_custom_call.1} parent=0
    #allocation4 [shape = 'u8[16384]{0}', space=vmem, size = 0x4000, scoped, tag = 'input window, operand 1, single buffered']
    #allocation5 [shape = 's32[2]{0}', space=sflag, size = 0x8, scoped, tag = 'scoped memory for tpu_custom_call.1']
    #allocation6 [shape = 's32[2]{0}', space=sflag, size = 0x8, scoped, tag = 'scoped memory for tpu_custom_call.1']
    #allocation7 [shape = 'u8[262144]{0}', space=vmem, size = 0x40000, scoped, tag = 'input window, operand 2']
    #allocation8 [shape = 's32[2]{0}', space=sflag, size = 0x8, scoped, tag = 'scoped memory for tpu_custom_call.1']
    #allocation9 [shape = 'u8[16384]{0}', space=vmem, size = 0x4000, scoped, tag = 'output window, operand 0']
    %10 = vsyncpa [#allocation5], 0
    %11 = vsyncpa [#allocation8], 0
    %s12 = scalar_lea.sflag [#allocation8], 1
    %13 = vsyncpa %s12, 0
    %14 = vsyncpa [#allocation6], 0
    %s15 = scalar_lea.sflag [#allocation6], 1
    %16 = vsyncpa %s15, 0
    loop: start=0, step=1, limit=4
    $region2: #{tpu_custom_call.1} parent=1 // loop_pre_header
      _
    $region3: #{tpu_custom_call.1} parent=1 // loop_header
      %s18 = sphi 0, %s22
      %p19 = scmp.ge.s32.totalorder %s18, 4
      %s25 = sphi 0, %s44
      %s26 = sphi 0, %s40
      %s27 = sphi 0, %s36
      %s28 = sphi 0, %s25
      %s29 = sphi 0, %s26
      %s30 = sphi 0, %s27
      %s31 = sphi 0, %s28
      %s32 = sphi 0, %s29
      %s33 = sphi 0, %s30
      %s49 = sphi 0, %s51
      %s52 = sphi 0, %s49
      %s53 = sphi 0, %s52
      %s69 = sphi 0, %s53
      %s77 = sphi 0, %s79
      %s80 = sphi 0, %s77
      %s81 = sphi 0, %s80
      %s97 = sphi 0, %s81
      %s103 = sphi 0, %s105
      %s106 = sphi 0, %s103
      %s107 = sphi 0, %s106
      %s123 = sphi 0, %s107
      %s131 = sphi 0, %s133
      %s134 = sphi 0, %s131
      %s135 = sphi 0, %s134
      %s151 = sphi 0, %s135
    $region4: #{tpu_custom_call.1} parent=1 // loop_header_branch
      %21 = sbr.rel (%p19) target = $region8
    $region5: #{tpu_custom_call.1} parent=1 // loop_body
      %s23 = ssub.s32 %s18, 1
      %s24 = ssub.s32 %s18, 2
      %s34 = sadd.s32 1, %s27
      %p35 = scmp.ge.s32.totalorder %s34, 1
      %s36 = scalar_select %p35, 0, %s34
      %s37 = sadd.s32 1, %s26
      %s38 = scalar_select %p35, %s37, %s26
      %p39 = scmp.ge.s32.totalorder %s38, 2
      %s40 = scalar_select %p39, 0, %s38
      %s41 = sadd.s32 1, %s25
      %s42 = scalar_select %p39, %s41, %s25
      %p43 = scmp.ge.s32.totalorder %s42, 1
      %s44 = scalar_select %p43, 0, %s42
      %s45 = ssub.s32 %s25, %s44
      %s46 = ssub.s32 %s27, %s36
      %s47 = sor.u32 %s45, %s46
      %p48 = scmp.eq.s32.totalorder %s47, 0
      %s50 = sadd.s32 %s49, 1
      %s51 = scalar_select %p48, %s49, %s50
      %p54 = pneg %p48
      %p55 = scmp.eq.s32.totalorder %s18, 1
      %p56 = por %p54, %p55
      %p57 = scmp.ne.s32.totalorder %s49, %s52
      %p58 = scmp.eq.s32.totalorder %s18, 0
      %p59 = por %p57, %p58
      %p60 = scmp.ne.s32.totalorder %s49, %s52
      %p61 = scmp.eq.s32.totalorder %s23, 1
      %p62 = por %p60, %p61
      %p63 = scmp.ne.s32.totalorder %s52, %s53
      %p64 = scmp.eq.s32.totalorder %s23, 0
      %p65 = por %p63, %p64
      %p66 = scmp.ne.s32.totalorder %s52, %s53
      %p67 = scmp.eq.s32.totalorder %s24, 1
      %p68 = por %p66, %p67
      %p70 = scmp.ne.s32.totalorder %s53, %s69
      %p71 = scmp.eq.s32.totalorder %s24, 0
      %p72 = por %p70, %p71
      %s73 = ssub.s32 %s27, %s36
      %s74 = ssub.s32 %s26, %s40
      %s75 = sor.u32 %s73, %s74
      %p76 = scmp.eq.s32.totalorder %s75, 0
      %s78 = sadd.s32 %s77, 1
      %s79 = scalar_select %p76, %s77, %s78
      %p82 = pneg %p76
      %p83 = scmp.eq.s32.totalorder %s18, 1
      %p84 = por %p82, %p83
      %p85 = scmp.ne.s32.totalorder %s77, %s80
      %p86 = scmp.eq.s32.totalorder %s18, 0
      %p87 = por %p85, %p86
      %p88 = scmp.ne.s32.totalorder %s77, %s80
      %p89 = scmp.eq.s32.totalorder %s23, 1
      %p90 = por %p88, %p89
      %p91 = scmp.ne.s32.totalorder %s80, %s81
      %p92 = scmp.eq.s32.totalorder %s23, 0
      %p93 = por %p91, %p92
      %p94 = scmp.ne.s32.totalorder %s80, %s81
      %p95 = scmp.eq.s32.totalorder %s24, 1
      %p96 = por %p94, %p95
      %p98 = scmp.ne.s32.totalorder %s81, %s97
      %p99 = scmp.eq.s32.totalorder %s24, 0
      %p100 = por %p98, %p99
      %s101 = ssub.s32 %s26, %s40
      %p102 = scmp.eq.s32.totalorder %s101, 0
      %s104 = sadd.s32 %s103, 1
      %s105 = scalar_select %p102, %s103, %s104
      %p108 = pneg %p102
      %p109 = scmp.eq.s32.totalorder %s18, 1
      %p110 = por %p108, %p109
      %p111 = scmp.ne.s32.totalorder %s103, %s106
      %p112 = scmp.eq.s32.totalorder %s18, 0
      %p113 = por %p111, %p112
      %p114 = scmp.ne.s32.totalorder %s103, %s106
      %p115 = scmp.eq.s32.totalorder %s23, 1
      %p116 = por %p114, %p115
      %p117 = scmp.ne.s32.totalorder %s106, %s107
      %p118 = scmp.eq.s32.totalorder %s23, 0
      %p119 = por %p117, %p118
      %p120 = scmp.ne.s32.totalorder %s106, %s107
      %p121 = scmp.eq.s32.totalorder %s24, 1
      %p122 = por %p120, %p121
      %p124 = scmp.ne.s32.totalorder %s107, %s123
      %p125 = scmp.eq.s32.totalorder %s24, 0
      %p126 = por %p124, %p125
      %s127 = ssub.s32 %s25, %s44
      %s128 = ssub.s32 %s26, %s40
      %s129 = sor.u32 %s127, %s128
      %p130 = scmp.eq.s32.totalorder %s129, 0
      %s132 = sadd.s32 %s131, 1
      %s133 = scalar_select %p130, %s131, %s132
      %p136 = pneg %p130
      %p137 = scmp.eq.s32.totalorder %s18, 1
      %p138 = por %p136, %p137
      %p139 = scmp.ne.s32.totalorder %s131, %s134
      %p140 = scmp.eq.s32.totalorder %s18, 0
      %p141 = por %p139, %p140
      %p142 = scmp.ne.s32.totalorder %s131, %s134
      %p143 = scmp.eq.s32.totalorder %s23, 1
      %p144 = por %p142, %p143
      %p145 = scmp.ne.s32.totalorder %s134, %s135
      %p146 = scmp.eq.s32.totalorder %s23, 0
      %p147 = por %p145, %p146
      %p148 = scmp.ne.s32.totalorder %s134, %s135
      %p149 = scmp.eq.s32.totalorder %s24, 1
      %p150 = por %p148, %p149
      %p152 = scmp.ne.s32.totalorder %s135, %s151
      %p153 = scmp.eq.s32.totalorder %s24, 0
      %p154 = por %p152, %p153
      %p155 = scmp.le.s32.totalorder 1, %s18
      %p156 = scmp.lt.s32.totalorder %s18, 3
      %p157 = pnand %p155, %p156
      %p158 = pneg %p157
      // Predicated region
      $region9: #{tpu_custom_call.1} parent=5 // pred_check
        _
      $region10: #{tpu_custom_call.1} parent=5 // pred_check_branch
        %160 = sbr.rel (%p157) target = $region12
      $region11: #{tpu_custom_call.1} parent=5 // pred_region
        %s161 = ssub.s32 %s18, 1
        // Predicated region
        $region13: #{tpu_custom_call.1} parent=11 // pred_check
          %p162 = pneg %p65
        $region14: #{tpu_custom_call.1} parent=11 // pred_check_branch
          %164 = sbr.rel (%p162) target = $region16
        $region15: #{tpu_custom_call.1} parent=11 // pred_region
          %s165 = smul.u32 2, %s28
          %s166 = smul.u32 4, %s30
          %168 = vsyncadd [#allocation5], 0
          %s169 = smul.addr %s165, 4
          %s170 = sadd.s32 %s166, %s169
          %s171 = smul.addr %s170, 4
          %s172 = scalar_lea.hbm %s1, %s171
          %s173 = sshll.u32 %s172, 4
          %s174 = int_to_ptr.hbm [resolvable:$true] %s173
          %s175 = sshll.u32 [#allocation4], 4
          %s176 = int_to_ptr.vmem [resolvable:$true] %s175
          %181 = dma.hbm_to_vmem [thread:$0]  %s174, 512, %s176, [#allocation5], 256, 256, 16
        $region16: #{tpu_custom_call.1} parent=11 // pred_fallthru
          _
      $region12: #{tpu_custom_call.1} parent=5 // pred_fallthru
        _
      %p182 = scmp.lt.s32.totalorder %s18, 2
      // Predicated region
      $region17: #{tpu_custom_call.1} parent=5 // pred_check
        %p183 = pneg %p182
      $region18: #{tpu_custom_call.1} parent=5 // pred_check_branch
        %185 = sbr.rel (%p183) target = $region20
      $region19: #{tpu_custom_call.1} parent=5 // pred_region
        // Predicated region
        $region21: #{tpu_custom_call.1} parent=19 // pred_check
          %p186 = pneg %p87
        $region22: #{tpu_custom_call.1} parent=19 // pred_check_branch
          %188 = sbr.rel (%p186) target = $region24
        $region23: #{tpu_custom_call.1} parent=19 // pred_region
          %s189 = sand.u32 %s77, 1
          %s190 = scalar_lea.sflag [#allocation8], %s189
          %s191 = sand.u32 %s77, 1
          %s192 = smul.addr %s191, 256
          %s193 = scalar_lea.vmem [#allocation7], %s192
          %s194 = smul.u32 64, %s27
          %196 = vsyncadd %s190, 0
          %s197 = smul.addr %s194, 2
          %s198 = sadd.s32 %s26, %s197
          %s199 = smul.addr %s198, 4
          %s200 = scalar_lea.hbm %s2, %s199
          %s201 = sshll.u32 %s200, 4
          %s202 = int_to_ptr.hbm [resolvable:$true] %s201
          %s203 = sshll.u32 %s193, 4
          %s204 = int_to_ptr.vmem [resolvable:$true] %s203
          %209 = dma.hbm_to_vmem [thread:$0]  %s202, 4096, %s204, %s190, 128, 64, 4
        $region24: #{tpu_custom_call.1} parent=19 // pred_fallthru
          _
        // Predicated region
        $region25: #{tpu_custom_call.1} parent=19 // pred_check
          %p210 = pneg %p113
        $region26: #{tpu_custom_call.1} parent=19 // pred_check_branch
          %212 = sbr.rel (%p210) target = $region28
        $region27: #{tpu_custom_call.1} parent=19 // pred_region
          %p213 = scmp.lt.s32.totalorder %s26, 1
          %s214 = scalar_select %p213, %s26, 1
          %s215 = scalar_lea.vmem %s3, %s214
        $region28: #{tpu_custom_call.1} parent=19 // pred_fallthru
          _
      $region20: #{tpu_custom_call.1} parent=5 // pred_fallthru
        _
      %p216 = scmp.le.s32.totalorder 1, %s18
      %p217 = scmp.lt.s32.totalorder %s18, 3
      %p218 = pnand %p216, %p217
      %p219 = pneg %p218
      // Predicated region
      $region29: #{tpu_custom_call.1} parent=5 // pred_check
        _
      $region30: #{tpu_custom_call.1} parent=5 // pred_check_branch
        %221 = sbr.rel (%p218) target = $region32
      $region31: #{tpu_custom_call.1} parent=5 // pred_region
        %s222 = ssub.s32 %s18, 1
        // Predicated region
        $region33: #{tpu_custom_call.1} parent=31 // pred_check
          %p223 = pneg %p65
        $region34: #{tpu_custom_call.1} parent=31 // pred_check_branch
          %225 = sbr.rel (%p223) target = $region36
        $region35: #{tpu_custom_call.1} parent=31 // pred_region
          %227 = dma.done [#allocation5], 512
        $region36: #{tpu_custom_call.1} parent=31 // pred_fallthru
          _
        %s228 = sand.u32 %s80, 1
        %s229 = scalar_lea.sflag [#allocation8], %s228
        %s230 = sand.u32 %s80, 1
        %s231 = smul.addr %s230, 256
        %s232 = scalar_lea.vmem [#allocation7], %s231
        // Predicated region
        $region37: #{tpu_custom_call.1} parent=31 // pred_check
          %p233 = pneg %p93
        $region38: #{tpu_custom_call.1} parent=31 // pred_check_branch
          %235 = sbr.rel (%p233) target = $region40
        $region39: #{tpu_custom_call.1} parent=31 // pred_region
          %237 = dma.done %s229, 4096
        $region40: #{tpu_custom_call.1} parent=31 // pred_fallthru
          _
        %p238 = pneg %p65
        %p239 = pneg %p62
        %s240 = sand.u32 %s80, 1
        %s241 = scalar_lea.sflag [#allocation8], %s240
        %s242 = sand.u32 %s80, 1
        %s243 = smul.addr %s242, 256
        %s244 = scalar_lea.vmem [#allocation7], %s243
        %p245 = pneg %p93
        %p246 = pneg %p90
        %p247 = scmp.lt.s32.totalorder %s29, 1
        %s248 = scalar_select %p247, %s29, 1
        %s249 = scalar_lea.vmem %s3, %s248
        %p250 = pneg %p119
        %p251 = pneg %p116
        %p252 = pneg %p147
        %p253 = pneg %p144
        %s254 = sand.u32 %s134, 1
        %s255 = scalar_lea.sflag [#allocation6], %s254
        %s256 = sand.u32 %s134, 1
        %s257 = smul.addr %s256, 16
        %s258 = scalar_lea.vmem [#allocation9], %s257
        %s259 = smul.u32 2, %s28
        %s260 = smul.u32 4, %s30
        %s261 = smul.u32 64, %s30
        %p262 = scmp.lt.s32.totalorder %s29, 1
        %s263 = scalar_select %p262, %s29, 1
        %s264 = scalar_lea.vmem %s3, %s263
        %s265 = smul.u32 2, %s28
        %s266 = sld [smem:[#allocation3]]
        %p267 = scmp.eq.s32.totalorder %s30, 0
        // Predicated region
        $region41: #{tpu_custom_call.1} parent=31 // pred_check
          %p268 = pneg %p267
        $region42: #{tpu_custom_call.1} parent=31 // pred_check_branch
          %270 = sbr.rel (%p268) target = $region44
        $region43: #{tpu_custom_call.1} parent=31 // pred_region
          %271 = vst [vmem:[%s258] sm:$0xff] 0.0
          %272 = vst [vmem:[%s258 + $0x8] sm:$0xff] 0.0
        $region44: #{tpu_custom_call.1} parent=31 // pred_fallthru
          _
        %v273 = vld [vmem:[%s258] sm:$0xff]
        %v274 = vld [vmem:[%s258 + $0x8] sm:$0xff]
        %v275 = vld [vmem:[#allocation4] sm:$0xff]
        %v276 = vld [vmem:[#allocation4 + $0x8] sm:$0xff]
        %v277 = vld [vmem:[#allocation4 + $0x10] sm:$0xff]
        %v278 = vld [vmem:[#allocation4 + $0x18] sm:$0xff]
        %v279 = vld [vmem:[%s232] sm:$0xf]
        %v280 = vld [vmem:[%s232 + $0x4] sm:$0xf]
        %v281 = vld [vmem:[%s232 + $0x8] sm:$0xf]
        %v282 = vld [vmem:[%s232 + $0xc] sm:$0xf]
        %v283 = vld [vmem:[%s232 + $0x10] sm:$0xf]
        %v284 = vld [vmem:[%s232 + $0x14] sm:$0xf]
        %v285 = vld [vmem:[%s232 + $0x18] sm:$0xf]
        %v286 = vld [vmem:[%s232 + $0x1c] sm:$0xf]
        %v287 = vld [vmem:[%s232 + $0x20] sm:$0xf]
        %v288 = vld [vmem:[%s232 + $0x24] sm:$0xf]
        %v289 = vld [vmem:[%s232 + $0x28] sm:$0xf]
        %v290 = vld [vmem:[%s232 + $0x2c] sm:$0xf]
        %v291 = vld [vmem:[%s232 + $0x30] sm:$0xf]
        %v292 = vld [vmem:[%s232 + $0x34] sm:$0xf]
        %v293 = vld [vmem:[%s232 + $0x38] sm:$0xf]
        %v294 = vld [vmem:[%s232 + $0x3c] sm:$0xf]
        %v295 = vld [vmem:[%s232 + $0x40] sm:$0xf]
        %v296 = vld [vmem:[%s232 + $0x44] sm:$0xf]
        %v297 = vld [vmem:[%s232 + $0x48] sm:$0xf]
        %v298 = vld [vmem:[%s232 + $0x4c] sm:$0xf]
        %v299 = vld [vmem:[%s232 + $0x50] sm:$0xf]
        %v300 = vld [vmem:[%s232 + $0x54] sm:$0xf]
        %v301 = vld [vmem:[%s232 + $0x58] sm:$0xf]
        %v302 = vld [vmem:[%s232 + $0x5c] sm:$0xf]
        %v303 = vld [vmem:[%s232 + $0x60] sm:$0xf]
        %v304 = vld [vmem:[%s232 + $0x64] sm:$0xf]
        %v305 = vld [vmem:[%s232 + $0x68] sm:$0xf]
        %v306 = vld [vmem:[%s232 + $0x6c] sm:$0xf]
        %v307 = vld [vmem:[%s232 + $0x70] sm:$0xf]
        %v308 = vld [vmem:[%s232 + $0x74] sm:$0xf]
        %v309 = vld [vmem:[%s232 + $0x78] sm:$0xf]
        %v310 = vld [vmem:[%s232 + $0x7c] sm:$0xf]
        %v311 = vld [vmem:[%s232 + $0x80] sm:$0xf]
        %v312 = vld [vmem:[%s232 + $0x84] sm:$0xf]
        %v313 = vld [vmem:[%s232 + $0x88] sm:$0xf]
        %v314 = vld [vmem:[%s232 + $0x8c] sm:$0xf]
        %v315 = vld [vmem:[%s232 + $0x90] sm:$0xf]
        %v316 = vld [vmem:[%s232 + $0x94] sm:$0xf]
        %v317 = vld [vmem:[%s232 + $0x98] sm:$0xf]
        %v318 = vld [vmem:[%s232 + $0x9c] sm:$0xf]
        %v319 = vld [vmem:[%s232 + $0xa0] sm:$0xf]
        %v320 = vld [vmem:[%s232 + $0xa4] sm:$0xf]
        %v321 = vld [vmem:[%s232 + $0xa8] sm:$0xf]
        %v322 = vld [vmem:[%s232 + $0xac] sm:$0xf]
        %v323 = vld [vmem:[%s232 + $0xb0] sm:$0xf]
        %v324 = vld [vmem:[%s232 + $0xb4] sm:$0xf]
        %v325 = vld [vmem:[%s232 + $0xb8] sm:$0xf]
        %v326 = vld [vmem:[%s232 + $0xbc] sm:$0xf]
        %v327 = vld [vmem:[%s232 + $0xc0] sm:$0xf]
        %v328 = vld [vmem:[%s232 + $0xc4] sm:$0xf]
        %v329 = vld [vmem:[%s232 + $0xc8] sm:$0xf]
        %v330 = vld [vmem:[%s232 + $0xcc] sm:$0xf]
        %v331 = vld [vmem:[%s232 + $0xd0] sm:$0xf]
        %v332 = vld [vmem:[%s232 + $0xd4] sm:$0xf]
        %v333 = vld [vmem:[%s232 + $0xd8] sm:$0xf]
        %v334 = vld [vmem:[%s232 + $0xdc] sm:$0xf]
        %v335 = vld [vmem:[%s232 + $0xe0] sm:$0xf]
        %v336 = vld [vmem:[%s232 + $0xe4] sm:$0xf]
        %v337 = vld [vmem:[%s232 + $0xe8] sm:$0xf]
        %v338 = vld [vmem:[%s232 + $0xec] sm:$0xf]
        %v339 = vld [vmem:[%s232 + $0xf0] sm:$0xf]
        %v340 = vld [vmem:[%s232 + $0xf4] sm:$0xf]
        %v341 = vld [vmem:[%s232 + $0xf8] sm:$0xf]
        %v342 = vld [vmem:[%s232 + $0xfc] sm:$0xf]
        %v347 = vunpack.c.l.b16 %v275
        %v348 = vunpack.c.h.b16 %v275
        %v349 = vunpack.c.l.b16 %v276
        %v350 = vunpack.c.h.b16 %v276
        %v351 = vunpack.c.l.b16 %v277
        %v352 = vunpack.c.h.b16 %v277
        %v353 = vunpack.c.l.b16 %v278
        %v354 = vunpack.c.h.b16 %v278
        %v355 = vpack.c.b16 %v351, %v347
        %v356 = vpack.c.b16 %v352, %v348
        %v357 = vpack.c.b16 %v353, %v349
        %v358 = vpack.c.b16 %v354, %v350
        %v427 = vunpack.c.l.b16 %v279
        %v428 = vunpack.c.l.b16 %v280
        %v429 = vunpack.c.l.b16 %v281
        %v430 = vunpack.c.l.b16 %v282
        %v431 = vunpack.c.l.b16 %v283
        %v432 = vunpack.c.l.b16 %v284
        %v433 = vunpack.c.l.b16 %v285
        %v434 = vunpack.c.l.b16 %v286
        %v435 = vunpack.c.l.b16 %v287
        %v436 = vunpack.c.l.b16 %v288
        %v437 = vunpack.c.l.b16 %v289
        %v438 = vunpack.c.l.b16 %v290
        %v439 = vunpack.c.l.b16 %v291
        %v440 = vunpack.c.l.b16 %v292
        %v441 = vunpack.c.l.b16 %v293
        %v442 = vunpack.c.l.b16 %v294
        %v443 = vunpack.c.l.b16 %v295
        %v444 = vunpack.c.l.b16 %v296
        %v445 = vunpack.c.l.b16 %v297
        %v446 = vunpack.c.l.b16 %v298
        %v447 = vunpack.c.l.b16 %v299
        %v448 = vunpack.c.l.b16 %v300
        %v449 = vunpack.c.l.b16 %v301
        %v450 = vunpack.c.l.b16 %v302
        %v451 = vunpack.c.l.b16 %v303
        %v452 = vunpack.c.l.b16 %v304
        %v453 = vunpack.c.l.b16 %v305
        %v454 = vunpack.c.l.b16 %v306
        %v455 = vunpack.c.l.b16 %v307
        %v456 = vunpack.c.l.b16 %v308
        %v457 = vunpack.c.l.b16 %v309
        %v458 = vunpack.c.l.b16 %v310
        %v459 = vunpack.c.l.b16 %v311
        %v460 = vunpack.c.l.b16 %v312
        %v461 = vunpack.c.l.b16 %v313
        %v462 = vunpack.c.l.b16 %v314
        %v463 = vunpack.c.l.b16 %v315
        %v464 = vunpack.c.l.b16 %v316
        %v465 = vunpack.c.l.b16 %v317
        %v466 = vunpack.c.l.b16 %v318
        %v467 = vunpack.c.l.b16 %v319
        %v468 = vunpack.c.l.b16 %v320
        %v469 = vunpack.c.l.b16 %v321
        %v470 = vunpack.c.l.b16 %v322
        %v471 = vunpack.c.l.b16 %v323
        %v472 = vunpack.c.l.b16 %v324
        %v473 = vunpack.c.l.b16 %v325
        %v474 = vunpack.c.l.b16 %v326
        %v475 = vunpack.c.l.b16 %v327
        %v476 = vunpack.c.l.b16 %v328
        %v477 = vunpack.c.l.b16 %v329
        %v478 = vunpack.c.l.b16 %v330
        %v479 = vunpack.c.l.b16 %v331
        %v480 = vunpack.c.l.b16 %v332
        %v481 = vunpack.c.l.b16 %v333
        %v482 = vunpack.c.l.b16 %v334
        %v483 = vunpack.c.l.b16 %v335
        %v484 = vunpack.c.l.b16 %v336
        %v485 = vunpack.c.l.b16 %v337
        %v486 = vunpack.c.l.b16 %v338
        %v487 = vunpack.c.l.b16 %v339
        %v488 = vunpack.c.l.b16 %v340
        %v489 = vunpack.c.l.b16 %v341
        %v490 = vunpack.c.l.b16 %v342
        %v491 = vpack.c.b16 %v428, %v427
        %v492 = vpack.c.b16 %v430, %v429
        %v493 = vpack.c.b16 %v432, %v431
        %v494 = vpack.c.b16 %v434, %v433
        %v495 = vpack.c.b16 %v436, %v435
        %v496 = vpack.c.b16 %v438, %v437
        %v497 = vpack.c.b16 %v440, %v439
        %v498 = vpack.c.b16 %v442, %v441
        %v499 = vpack.c.b16 %v444, %v443
        %v500 = vpack.c.b16 %v446, %v445
        %v501 = vpack.c.b16 %v448, %v447
        %v502 = vpack.c.b16 %v450, %v449
        %v503 = vpack.c.b16 %v452, %v451
        %v504 = vpack.c.b16 %v454, %v453
        %v505 = vpack.c.b16 %v456, %v455
        %v506 = vpack.c.b16 %v458, %v457
        %v507 = vpack.c.b16 %v460, %v459
        %v508 = vpack.c.b16 %v462, %v461
        %v509 = vpack.c.b16 %v464, %v463
        %v510 = vpack.c.b16 %v466, %v465
        %v511 = vpack.c.b16 %v468, %v467
        %v512 = vpack.c.b16 %v470, %v469
        %v513 = vpack.c.b16 %v472, %v471
        %v514 = vpack.c.b16 %v474, %v473
        %v515 = vpack.c.b16 %v476, %v475
        %v516 = vpack.c.b16 %v478, %v477
        %v517 = vpack.c.b16 %v480, %v479
        %v518 = vpack.c.b16 %v482, %v481
        %v519 = vpack.c.b16 %v484, %v483
        %v520 = vpack.c.b16 %v486, %v485
        %v521 = vpack.c.b16 %v488, %v487
        %v522 = vpack.c.b16 %v490, %v489
        %555 = vmatpush.bf16.msra.mxu0 %v498
        %556 = vmatpush.bf16.msra.mxu0 %v497
        %557 = vmatpush.bf16.msra.mxu0 %v496
        %558 = vmatpush.bf16.msra.mxu0 %v495
        %559 = vmatpush.bf16.msra.mxu0 %v494
        %560 = vmatpush.bf16.msra.mxu0 %v493
        %561 = vmatpush.bf16.msra.mxu0 %v492
        %562 = vmatpush.bf16.msra.mxu0 %v491
        %563 = vmatmul.bf16.gmra.mxu0 %v355
        %v564 = vpop.f32.mrf.mxu0
        %v565 = vadd.f32 0.0, %v564
        %v566 = vpop.f32.mrf.mxu0
        %v567 = vadd.f32 0.0, %v566
        %568 = vdwg.mxu0
        %569 = vmatpush.bf16.msra.mxu0 %v506
        %570 = vmatpush.bf16.msra.mxu0 %v505
        %571 = vmatpush.bf16.msra.mxu0 %v504
        %572 = vmatpush.bf16.msra.mxu0 %v503
        %573 = vmatpush.bf16.msra.mxu0 %v502
        %574 = vmatpush.bf16.msra.mxu0 %v501
        %575 = vmatpush.bf16.msra.mxu0 %v500
        %576 = vmatpush.bf16.msra.mxu0 %v499
        %577 = vmatmul.bf16.gmra.mxu0 %v356
        %v578 = vpop.f32.mrf.mxu0
        %v579 = vadd.f32 %v565, %v578
        %v580 = vpop.f32.mrf.mxu0
        %v581 = vadd.f32 %v567, %v580
        %582 = vdwg.mxu0
        %583 = vmatpush.bf16.msra.mxu0 %v514
        %584 = vmatpush.bf16.msra.mxu0 %v513
        %585 = vmatpush.bf16.msra.mxu0 %v512
        %586 = vmatpush.bf16.msra.mxu0 %v511
        %587 = vmatpush.bf16.msra.mxu0 %v510
        %588 = vmatpush.bf16.msra.mxu0 %v509
        %589 = vmatpush.bf16.msra.mxu0 %v508
        %590 = vmatpush.bf16.msra.mxu0 %v507
        %591 = vmatmul.bf16.gmra.mxu0 %v357
        %v592 = vpop.f32.mrf.mxu0
        %v593 = vadd.f32 %v579, %v592
        %v594 = vpop.f32.mrf.mxu0
        %v595 = vadd.f32 %v581, %v594
        %596 = vdwg.mxu0
        %597 = vmatpush.bf16.msra.mxu0 %v522
        %598 = vmatpush.bf16.msra.mxu0 %v521
        %599 = vmatpush.bf16.msra.mxu0 %v520
        %600 = vmatpush.bf16.msra.mxu0 %v519
        %601 = vmatpush.bf16.msra.mxu0 %v518
        %602 = vmatpush.bf16.msra.mxu0 %v517
        %603 = vmatpush.bf16.msra.mxu0 %v516
        %604 = vmatpush.bf16.msra.mxu0 %v515
        %605 = vmatmul.bf16.gmra.mxu0 %v358
        %v606 = vpop.f32.mrf.mxu0
        %v607 = vadd.f32 %v593, %v606
        %v608 = vpop.f32.mrf.mxu0
        %v609 = vadd.f32 %v595, %v608
        %610 = vdwg.mxu0
        %v611 = vadd.f32 %v273, %v607
        %v612 = vadd.f32 %v274, %v609
        %613 = vst [vmem:[%s258] sm:$0xff] %v611
        %614 = vst [vmem:[%s258 + $0x8] sm:$0xff] %v612
        // Predicated region
        $region45: #{tpu_custom_call.1} parent=31 // pred_check
          %p615 = pneg %p267
        $region46: #{tpu_custom_call.1} parent=31 // pred_check_branch
          %617 = sbr.rel (%p615) target = $region48
        $region47: #{tpu_custom_call.1} parent=31 // pred_region
          %v618 = vld [vmem:[%s258] sm:$0xff]
          %v619 = vld [vmem:[%s258 + $0x8] sm:$0xff]
          %v620 = vld [vmem:[%s264] sm:$0x1]
          %v622 = vperm.slane %v620, 0
          %v624 = vadd.f32 %v618, %v622
          %v625 = vadd.f32 %v619, %v622
          %v626 = vmax.f32 %v624, 0.0
          %v627 = vmax.f32 %v625, 0.0
          %v628 = vlaneseq
          %v629 = vshrl.u32 %v628, 7
          %v630 = vadd.s32 %v629, 8
          %s631 = smul.u32 %s28, 16
          %v632 = vstv %s631
          %v633 = vadd.s32 %v629, %v632
          %v634 = vadd.s32 %v630, %v632
          %v635 = vlaneseq
          %v636 = vand.u32 %v635, 127
          %s637 = smul.u32 %s29, 128
          %v638 = vstv %s637
          %v639 = vadd.s32 %v636, %v638
          %v640 = vmul.u32 %v633, 256
          %v641 = vmul.u32 %v634, 256
          %v642 = vadd.s32 %v640, %v639
          %v643 = vadd.s32 %v641, %v639
          %s644 = smul.u32 %s266, 2654435769
          %v645 = vstv %s644
          %v646 = vadd.s32 %v642, %v645
          %v647 = vadd.s32 %v643, %v645
          %v648 = vshrl.u32 %v646, 16
          %v649 = vshrl.u32 %v647, 16
          %v650 = vxor.u32 %v646, %v648
          %v651 = vxor.u32 %v647, %v649
          %v652 = vmul.u32 %v650, 2146121005
          %v653 = vmul.u32 %v651, 2146121005
          %v654 = vshrl.u32 %v652, 15
          %v655 = vshrl.u32 %v653, 15
          %v656 = vxor.u32 %v652, %v654
          %v657 = vxor.u32 %v653, %v655
          %v658 = vmul.u32 %v656, 2221713035
          %v659 = vmul.u32 %v657, 2221713035
          %v660 = vshrl.u32 %v658, 16
          %v661 = vshrl.u32 %v659, 16
          %v662 = vxor.u32 %v658, %v660
          %v663 = vxor.u32 %v659, %v661
          %v664 = vadd.s32 %v662, 2147483648
          %vm666 = vcmp.ge.s32.totalorder %v664, 0
          %v667 = vadd.s32 %v663, 2147483648
          %vm669 = vcmp.ge.s32.totalorder %v667, 0
          %v670 = vmul.f32 %v626, 2.0
          %v671 = vmul.f32 %v627, 2.0
          %v672 = vsel %vm666, %v670, 0.0
          %v673 = vsel %vm669, %v671, 0.0
          %674 = vst [vmem:[%s258] sm:$0xff] %v672
          %675 = vst [vmem:[%s258 + $0x8] sm:$0xff] %v673
        $region48: #{tpu_custom_call.1} parent=31 // pred_fallthru
          _
        %s676 = sand.u32 %s134, 1
        %s677 = scalar_lea.sflag [#allocation6], %s676
        %s678 = sand.u32 %s134, 1
        %s679 = smul.addr %s678, 16
        %s680 = scalar_lea.vmem [#allocation9], %s679
        // Predicated region
        $region49: #{tpu_custom_call.1} parent=31 // pred_check
          %p681 = pneg %p144
        $region50: #{tpu_custom_call.1} parent=31 // pred_check_branch
          %683 = sbr.rel (%p681) target = $region52
        $region51: #{tpu_custom_call.1} parent=31 // pred_region
          %s684 = smul.u32 2, %s28
          %686 = vsyncadd %s677, 0
          %s687 = smul.addr %s684, 2
          %s688 = sadd.s32 %s29, %s687
          %s689 = smul.addr %s688, 8
          %s690 = scalar_lea.hbm %s4, %s689
          %s691 = sshll.u32 %s680, 4
          %s692 = int_to_ptr.vmem [resolvable:$true] %s691
          %s693 = sshll.u32 %s690, 4
          %s694 = int_to_ptr.hbm [resolvable:$true] %s693
          %699 = dma.vmem_to_hbm [thread:$0]  %s692, 256, %s694, %s677, 128, 256, 8
        $region52: #{tpu_custom_call.1} parent=31 // pred_fallthru
          _
      $region32: #{tpu_custom_call.1} parent=5 // pred_fallthru
        _
      %p700 = scmp.le.s32.totalorder 2, %s18
      // Predicated region
      $region53: #{tpu_custom_call.1} parent=5 // pred_check
        %p701 = pneg %p700
      $region54: #{tpu_custom_call.1} parent=5 // pred_check_branch
        %703 = sbr.rel (%p701) target = $region56
      $region55: #{tpu_custom_call.1} parent=5 // pred_region
        %s704 = ssub.s32 %s18, 2
        // Predicated region
        $region57: #{tpu_custom_call.1} parent=55 // pred_check
          %p705 = pneg %p150
        $region58: #{tpu_custom_call.1} parent=55 // pred_check_branch
          %707 = sbr.rel (%p705) target = $region60
        $region59: #{tpu_custom_call.1} parent=55 // pred_region
          %s708 = sand.u32 %s135, 1
          %s709 = scalar_lea.sflag [#allocation6], %s708
          %s710 = sand.u32 %s135, 1
          %s711 = smul.addr %s710, 16
          %s712 = scalar_lea.vmem [#allocation9], %s711
          %714 = dma.done %s709, 256
        $region60: #{tpu_custom_call.1} parent=55 // pred_fallthru
          _
      $region56: #{tpu_custom_call.1} parent=5 // pred_fallthru
        _
    $region6: #{tpu_custom_call.1} parent=1 // loop_footer
      %s22 = sadd.s32 1, %s18
    $region7: #{tpu_custom_call.1} parent=1 // loop_footer_branch
      %17 = sbr.rel target = $region3
    $region8: #{tpu_custom_call.1} parent=1 // loop_exit
      _
    %715 = vsyncpa [#allocation5], 1
    %s716 = scalar_lea.sflag [#allocation5], 1
    %717 = vsyncpa %s716, 1
    %718 = vsyncpa [#allocation8], 1
    %s719 = scalar_lea.sflag [#allocation8], 1
    %720 = vsyncpa %s719, 1
    %721 = vsyncpa [#allocation6], 1
    %s722 = scalar_lea.sflag [#allocation6], 1
    %723 = vsyncpa %s722, 1

</llo_original>
